<compile_context>
chip_gen: v5e
topology: v5e:2x2
jax: 0.10.0
libtpu: 0.0.40
codegen_flags: <defaults>
</compile_context>

<pallas_src>
import functools

import jax
import jax.numpy as jnp
from jax.experimental import pallas as pl
from jax.experimental.pallas import tpu as pltpu

LANE = 128                      # lane width: pad hidden/out feature dims to this
SUBLANE = 8                     # f32 sublane tile
OUT_SZ = 10                     # fc2 output features (fixed by the torch module)
VMEM_BUDGET = 32 * 1024 * 1024  # keep our own footprint estimate under this
VMEM_LIMIT = 48 * 1024 * 1024   # scoped VMEM limit handed to Mosaic


def _round_up(n, m):
    return ((n + m - 1) // m) * m


def _mlp_kernel(x_ref, w1_ref, b1_ref, w2_ref, b2_ref, o_ref, *, out_sz):
    # Cast activations to bf16 in-kernel (VPU) -- no wrapper-side padded copy.
    x = x_ref[...].astype(jnp.bfloat16)
    # fc1: (TB, in) bf16 @ (in, hid_p) bf16 -> f32 accumulate on the MXU.
    h = jnp.dot(x, w1_ref[...], preferred_element_type=jnp.float32)
    # Bias + ReLU in f32 (v5e has no bf16 VPU path).
    h = jnp.maximum(h + b1_ref[...], 0.0)
    # fc2: lane-dense padded N=128 on the MXU, f32 accumulate.
    out = jnp.dot(h.astype(w2_ref.dtype), w2_ref[...],
                  preferred_element_type=jnp.float32)
    out = out + b2_ref[...]
    # Store only the real output columns: writeback is (TB, out_sz) f32
    # instead of (TB, 128) f32 -> 12.8x less HBM write traffic.
    o_ref[...] = out[:, :out_sz].astype(o_ref.dtype)


def prepare_params(w1, b1, w2, b2):
    """One-time parameter prep (call OUTSIDE the hot path / training step).

    w1: (input_sz, hidden_sz)   b1: (hidden_sz,)    [already (in, out) layout,
    w2: (hidden_sz, OUT_SZ)     b2: (OUT_SZ,)        i.e. torch W transposed]

    Returns bf16 weights (hidden/out lane-padded to 128; K of fc1 left
    unpadded so raw f32 activations can be fed directly) and f32 (1, N)
    biases; padded entries are exactly zero so they do not perturb results.
    """
    input_sz, hidden_sz = w1.shape
    out_sz = w2.shape[1]
    hid_p = _round_up(hidden_sz, LANE)
    out_p = _round_up(out_sz, LANE)

    w1p = jnp.zeros((input_sz, hid_p), jnp.bfloat16)
    w1p = w1p.at[:, :hidden_sz].set(w1.astype(jnp.bfloat16))
    b1p = jnp.zeros((1, hid_p), jnp.float32)
    b1p = b1p.at[0, :hidden_sz].set(b1.astype(jnp.float32))
    w2p = jnp.zeros((hid_p, out_p), jnp.bfloat16)
    w2p = w2p.at[:hidden_sz, :out_sz].set(w2.astype(jnp.bfloat16))
    b2p = jnp.zeros((1, out_p), jnp.float32)
    b2p = b2p.at[0, :out_sz].set(b2.astype(jnp.float32))
    return w1p, b1p, w2p, b2p


def _vmem_bytes(tb, in_f, hid_p, out_p):
    """Rough per-call VMEM footprint estimate (double-buffered IO + weights
    + in-kernel intermediates). Conservative, used only to cap TB."""
    x_io = 2 * tb * in_f * 4                 # double-buffered f32 input tiles
    o_io = 2 * tb * out_p * 4                # output tiles (lane-padded in VMEM)
    w_res = 2 * (in_f * hid_p * 2 + hid_p * out_p * 2 + hid_p * 4 + out_p * 4)
    interm = tb * in_f * 2 + tb * hid_p * 6 + tb * out_p * 4
    return x_io + o_io + w_res + interm


@functools.partial(jax.jit, static_argnames=("input_sz", "out_sz", "block_b"))
def net_forward(x, w1p, b1p, w2p, b2p, *, input_sz, out_sz=OUT_SZ, block_b=1024):
    """Pallas equivalent of Net.forward.

    x: any shape that flattens to (-1, input_sz), fed as f32 (cast in-kernel)
    w1p/b1p/w2p/b2p: outputs of prepare_params
    returns: (batch, out_sz) float32
    """
    x2d = x.reshape(-1, input_sz).astype(jnp.float32)
    B = x2d.shape[0]
    in_f, hid_p = w1p.shape
    out_p = w2p.shape[1]

    # Batch tile: large by default (amortizes per-step pipeline overhead) but
    # never more than ceil(B/2) -> >=2 grid steps for mid/large batches so the
    # "parallel" axis can shard across both TensorCores on v7x, and no padded
    # rows are ever DMA'd for small batches.
    TB = min(block_b, _round_up(max(1, (B + 1) // 2), SUBLANE))
    TB = max(TB, SUBLANE)
    while TB > SUBLANE and _vmem_bytes(TB, in_f, hid_p, out_p) > VMEM_BUDGET:
        TB = max(SUBLANE, _round_up(TB // 2, SUBLANE))

    grid = (pl.cdiv(B, TB),)   # partial last block: Pallas masks the edge rows

    flops = 2 * B * (in_f * hid_p + hid_p * out_p)
    bytes_accessed = (x2d.size * 4 + w1p.size * 2 + w2p.size * 2
                      + b1p.size * 4 + b2p.size * 4 + B * out_sz * 4)

    out = pl.pallas_call(
        functools.partial(_mlp_kernel, out_sz=out_sz),
        out_shape=jax.ShapeDtypeStruct((B, out_sz), jnp.float32),
        grid=grid,
        in_specs=[
            # Activations: raw f32, tiled over the batch grid axis
            # (last block dim == full array dim, so no lane padding needed).
            pl.BlockSpec((TB, in_f), lambda i: (i, 0)),
            # Weights / biases: same block every step -> VMEM-resident.
            pl.BlockSpec((in_f, hid_p), lambda i: (0, 0)),
            pl.BlockSpec((1, hid_p), lambda i: (0, 0)),
            pl.BlockSpec((hid_p, out_p), lambda i: (0, 0)),
            pl.BlockSpec((1, out_p), lambda i: (0, 0)),
        ],
        # Unpadded output: last block dim == full array dim (out_sz).
        out_specs=pl.BlockSpec((TB, out_sz), lambda i: (i, 0)),
        compiler_params=pltpu.CompilerParams(
            dimension_semantics=("parallel",),
            vmem_limit_bytes=VMEM_LIMIT),
        cost_estimate=pl.CostEstimate(
            flops=flops, transcendentals=0, bytes_accessed=bytes_accessed),
    )(x2d, w1p, b1p, w2p, b2p)

    return out


def _torch_linear_init(key, in_features, out_features):
    """Deterministic init matching nn.Linear's default (uniform +-1/sqrt(in)).
    Weight is stored pre-transposed: (in_features, out_features)."""
    kw, kb = jax.random.split(key)
    bound = 1.0 / jnp.sqrt(jnp.float32(in_features))
    w = jax.random.uniform(kw, (in_features, out_features), jnp.float32,
                           minval=-bound, maxval=bound)
    b = jax.random.uniform(kb, (out_features,), jnp.float32,
                           minval=-bound, maxval=bound)
    return w, b


if __name__ == "__main__":
    INPUT_SZ = 32
    HIDDEN_SZ = 32
    BATCH = 8

    key = jax.random.PRNGKey(0)
    kx, k1, k2 = jax.random.split(key, 3)

    # Input given in an "image-like" shape that view(-1, input_sz) flattens.
    x = jax.random.normal(kx, (BATCH, 4, 8), jnp.float32)  # 4*8 == INPUT_SZ

    w1, b1 = _torch_linear_init(k1, INPUT_SZ, HIDDEN_SZ)
    w2, b2 = _torch_linear_init(k2, HIDDEN_SZ, OUT_SZ)

    # One-time parameter prep (outside the hot path).
    w1p, b1p, w2p, b2p = prepare_params(w1, b1, w2, b2)

    out = net_forward(x, w1p, b1p, w2p, b2p, input_sz=INPUT_SZ)
    out = jax.block_until_ready(out)

    # Reference in plain JAX at matching precision (bf16 operands, f32 accum).
    x2d = x.reshape(-1, INPUT_SZ)
    h_ref = jnp.dot(x2d.astype(jnp.bfloat16), w1.astype(jnp.bfloat16),
                    preferred_element_type=jnp.float32) + b1
    h_ref = jnp.maximum(h_ref, 0.0)
    ref = jnp.dot(h_ref.astype(jnp.bfloat16), w2.astype(jnp.bfloat16),
                  preferred_element_type=jnp.float32) + b2

    assert out.shape == (BATCH, OUT_SZ), out.shape
    assert jnp.allclose(out, ref, atol=1e-2, rtol=1e-2), (
        float(jnp.max(jnp.abs(out - ref))))

    print("KERNEL_OK")
</pallas_src>

<mosaic_0001>
module attributes {stable_mosaic.version = 11 : i64} {
  func.func @_mlp_kernel(%arg0: i32, %arg1: memref<8x32xf32, #tpu.memory_space<vmem>>, %arg2: memref<32x128xbf16, #tpu.memory_space<vmem>>, %arg3: memref<1x128xf32, #tpu.memory_space<vmem>>, %arg4: memref<128x128xbf16, #tpu.memory_space<vmem>>, %arg5: memref<1x128xf32, #tpu.memory_space<vmem>>, %arg6: memref<8x10xf32, #tpu.memory_space<vmem>>) attributes {dimension_semantics = [#tpu.dimension_semantics<parallel>], iteration_bounds = array<i64: 1>, scalar_prefetch = 0 : i64, scratch_operands = 0 : i64, tpu.core_type = #tpu.core_type<tc>, window_params = [{transform_indices = @transform_0, window_bounds = array<i64: 8, 32>}, {pipeline_mode = #tpu.pipeline_mode<synchronous>, transform_indices = @transform_1, window_bounds = array<i64: 32, 128>}, {pipeline_mode = #tpu.pipeline_mode<synchronous>, transform_indices = @transform_2, window_bounds = array<i64: 1, 128>}, {pipeline_mode = #tpu.pipeline_mode<synchronous>, transform_indices = @transform_3, window_bounds = array<i64: 128, 128>}, {pipeline_mode = #tpu.pipeline_mode<synchronous>, transform_indices = @transform_4, window_bounds = array<i64: 1, 128>}, {transform_indices = @transform_5, window_bounds = array<i64: 8, 10>}]} {
    %c0 = arith.constant 0 : index
    %c0_0 = arith.constant 0 : index
    %0 = vector.load %arg1[%c0, %c0_0] : memref<8x32xf32, #tpu.memory_space<vmem>>, vector<8x32xf32>
    %1 = arith.truncf %0 : vector<8x32xf32> to vector<8x32xbf16>
    %c0_1 = arith.constant 0 : index
    %c0_2 = arith.constant 0 : index
    %2 = vector.load %arg2[%c0_1, %c0_2] : memref<32x128xbf16, #tpu.memory_space<vmem>>, vector<32x128xbf16>
    %cst = arith.constant dense<0.000000e+00> : vector<8x128xf32>
    %3 = tpu.matmul %1, %2, %cst {dimension_numbers = #tpu.dot_dimension_numbers<[1], [0], [0], [1], [0, 0, 1, 1], [], []>} : vector<8x32xbf16>, vector<32x128xbf16>, vector<8x128xf32> -> vector<8x128xf32>
    %c0_3 = arith.constant 0 : index
    %c0_4 = arith.constant 0 : index
    %4 = vector.load %arg3[%c0_3, %c0_4] : memref<1x128xf32, #tpu.memory_space<vmem>>, vector<1x128xf32>
    %5 = vector.broadcast %4 : vector<1x128xf32> to vector<8x128xf32>
    %6 = arith.addf %3, %5 : vector<8x128xf32>
    %cst_5 = arith.constant 0.000000e+00 : f32
    %7 = vector.broadcast %cst_5 : f32 to vector<8x128xf32>
    %8 = arith.maximumf %6, %7 : vector<8x128xf32>
    %9 = arith.truncf %8 : vector<8x128xf32> to vector<8x128xbf16>
    %c0_6 = arith.constant 0 : index
    %c0_7 = arith.constant 0 : index
    %10 = vector.load %arg4[%c0_6, %c0_7] : memref<128x128xbf16, #tpu.memory_space<vmem>>, vector<128x128xbf16>
    %cst_8 = arith.constant dense<0.000000e+00> : vector<8x128xf32>
    %11 = tpu.matmul %9, %10, %cst_8 {dimension_numbers = #tpu.dot_dimension_numbers<[1], [0], [0], [1], [0, 0, 1, 1], [], []>} : vector<8x128xbf16>, vector<128x128xbf16>, vector<8x128xf32> -> vector<8x128xf32>
    %c0_9 = arith.constant 0 : index
    %c0_10 = arith.constant 0 : index
    %12 = vector.load %arg5[%c0_9, %c0_10] : memref<1x128xf32, #tpu.memory_space<vmem>>, vector<1x128xf32>
    %13 = vector.broadcast %12 : vector<1x128xf32> to vector<8x128xf32>
    %14 = arith.addf %11, %13 : vector<8x128xf32>
    %15 = vector.extract_strided_slice %14 {offsets = [0, 0], sizes = [8, 10], strides = [1, 1]} : vector<8x128xf32> to vector<8x10xf32>
    %c0_11 = arith.constant 0 : index
    %c0_12 = arith.constant 0 : index
    %16 = vector.load %arg6[%c0_11, %c0_12] : memref<8x10xf32, #tpu.memory_space<vmem>>, vector<8x10xf32>
    tpu.vector_store %arg6[%c0_11, %c0_12], %15 {strides = array<i32>} : memref<8x10xf32, #tpu.memory_space<vmem>>, vector<8x10xf32>,
    return
  }
  func.func @transform_0(%arg0: i32) -> (i32, i32) {
    %c0_i32 = arith.constant 0 : i32
    %c0_i32_0 = arith.constant 0 : i32
    return %arg0, %c0_i32 : i32, i32
  }
  func.func @transform_1(%arg0: i32) -> (i32, i32) {
    %c0_i32 = arith.constant 0 : i32
    %c0_i32_0 = arith.constant 0 : i32
    %c0_i32_1 = arith.constant 0 : i32
    return %c0_i32, %c0_i32_0 : i32, i32
  }
  func.func @transform_2(%arg0: i32) -> (i32, i32) {
    %c0_i32 = arith.constant 0 : i32
    %c0_i32_0 = arith.constant 0 : i32
    %c0_i32_1 = arith.constant 0 : i32
    return %c0_i32, %c0_i32_0 : i32, i32
  }
  func.func @transform_3(%arg0: i32) -> (i32, i32) {
    %c0_i32 = arith.constant 0 : i32
    %c0_i32_0 = arith.constant 0 : i32
    %c0_i32_1 = arith.constant 0 : i32
    return %c0_i32, %c0_i32_0 : i32, i32
  }
  func.func @transform_4(%arg0: i32) -> (i32, i32) {
    %c0_i32 = arith.constant 0 : i32
    %c0_i32_0 = arith.constant 0 : i32
    %c0_i32_1 = arith.constant 0 : i32
    return %c0_i32, %c0_i32_0 : i32, i32
  }
  func.func @transform_5(%arg0: i32) -> (i32, i32) {
    %c0_i32 = arith.constant 0 : i32
    %c0_i32_0 = arith.constant 0 : i32
    return %arg0, %c0_i32 : i32, i32
  }
}

</mosaic_0001>

<llo_original>
// kernel: net_forward.1
$region0: #{net_forward.1}
  #allocation0 [shape = 'u32[]', space=smem, size = 0x4, offset = 0x4, fixed_abs, tag = 'smem constant byte address 0x4 - core index']
  #allocation1 [shape = 'u32[72,128]{1,0:T(1,128)}', space=vmem, size = 0x9000, scoped, tag = 'internal scratch']
  %s0 = inlined_call_operand.vmem [shape: f32[8,32], index: 0, kind: input, shape index: {}]
  %s1 = inlined_call_operand.vmem [shape: bf16[32,128], index: 1, kind: input, shape index: {}]
  %s2 = inlined_call_operand.vmem [shape: f32[1,128], index: 2, kind: input, shape index: {}]
  %s3 = inlined_call_operand.hbm [shape: bf16[128,128], index: 3, kind: input, shape index: {}]
  %s4 = inlined_call_operand.vmem [shape: f32[1,128], index: 4, kind: input, shape index: {}]
  %s5 = inlined_call_operand.hbm [shape: f32[8,10], index: 5, kind: output, shape index: {}]
  %s6 = sld [smem:[#allocation0]]
  $region34: #{net_forward.1} parent=0
    _
  %s8 = ssub.s32 1, %s6
  %s9 = scalar_select 0, %s8, %s6
  $region1: #{net_forward.1} parent=0
    #allocation2 [shape = 'u8[32768]{0}', space=vmem, size = 0x8000, scoped, tag = 'input window, operand 3, single buffered']
    #allocation3 [shape = 's32[1]{0}', space=sflag, size = 0x4, scoped, tag = 'scoped memory for net_forward.1']
    #allocation4 [shape = 's32[1]{0}', space=sflag, size = 0x4, scoped, tag = 'scoped memory for net_forward.1']
    #allocation5 [shape = 'u8[4096]{0}', space=vmem, size = 0x1000, scoped, tag = 'output window, operand 0, single buffered']
    %10 = vsyncpa [#allocation3], 0
    %11 = vsyncpa [#allocation4], 0
    // Predicated region
    $region2: #{net_forward.1} parent=1 // pred_check
      _
    $region3: #{net_forward.1} parent=1 // pred_check_branch
      %13 = sbr.rel (0) target = $region5
    $region4: #{net_forward.1} parent=1 // pred_region
      _
    $region5: #{net_forward.1} parent=1 // pred_fallthru
      _
    // Predicated region
    $region6: #{net_forward.1} parent=1 // pred_check
      _
    $region7: #{net_forward.1} parent=1 // pred_check_branch
      %15 = sbr.rel (0) target = $region9
    $region8: #{net_forward.1} parent=1 // pred_region
      _
    $region9: #{net_forward.1} parent=1 // pred_fallthru
      _
    // Predicated region
    $region10: #{net_forward.1} parent=1 // pred_check
      _
    $region11: #{net_forward.1} parent=1 // pred_check_branch
      %17 = sbr.rel (0) target = $region13
    $region12: #{net_forward.1} parent=1 // pred_region
      _
    $region13: #{net_forward.1} parent=1 // pred_fallthru
      _
    // Predicated region
    $region14: #{net_forward.1} parent=1 // pred_check
      _
    $region15: #{net_forward.1} parent=1 // pred_check_branch
      %19 = sbr.rel (0) target = $region17
    $region16: #{net_forward.1} parent=1 // pred_region
      %21 = vsyncadd [#allocation3], 0
      %s22 = sshll.u32 %s3, 4
      %s23 = int_to_ptr.hbm [resolvable:$true] %s22
      %s24 = sshll.u32 [#allocation2], 4
      %s25 = int_to_ptr.vmem [resolvable:$true] %s24
      %30 = dma.hbm_to_vmem [thread:$0]  %s23, 1024, %s25, [#allocation3], 64, 64, 4
    $region17: #{net_forward.1} parent=1 // pred_fallthru
      _
    // Predicated region
    $region18: #{net_forward.1} parent=1 // pred_check
      _
    $region19: #{net_forward.1} parent=1 // pred_check_branch
      %32 = sbr.rel (0) target = $region21
    $region20: #{net_forward.1} parent=1 // pred_region
      _
    $region21: #{net_forward.1} parent=1 // pred_fallthru
      _
    // Predicated region
    $region22: #{net_forward.1} parent=1 // pred_check
      _
    $region23: #{net_forward.1} parent=1 // pred_check_branch
      %34 = sbr.rel (0) target = $region25
    $region24: #{net_forward.1} parent=1 // pred_region
      %36 = dma.done [#allocation3], 1024
    $region25: #{net_forward.1} parent=1 // pred_fallthru
      _
    %v38 = vld [vmem:[%s0] sm:$0xff]
    %v39 = vpack.c.bf16 %v38, %v38
    %v40 = vld [vmem:[%s1] sm:$0xf]
    %v41 = vld [vmem:[%s1 + $0x4] sm:$0xf]
    %v42 = vld [vmem:[%s1 + $0x8] sm:$0xf]
    %v43 = vld [vmem:[%s1 + $0xc] sm:$0xf]
    %v44 = vld [vmem:[%s2] sm:$0x1]
    %v46 = vperm.slane %v44, 0
    %v52 = vunpack.c.l.b16 %v40
    %v53 = vunpack.c.l.b16 %v41
    %v54 = vunpack.c.l.b16 %v42
    %v55 = vunpack.c.l.b16 %v43
    %v56 = vpack.c.b16 %v53, %v52
    %v57 = vpack.c.b16 %v55, %v54
    %vm60 = vcmask 261120
    %v62 = vsel %vm60, %v39, 0
    %64 = vmatpush.bf16.msra.mxu0 0
    %65 = vmatpush.bf16.msra.mxu0 0
    %66 = vmatpush.bf16.msra.mxu0 0
    %67 = vmatpush.bf16.msra.mxu0 0
    %68 = vmatpush.bf16.msra.mxu0 0
    %69 = vmatpush.bf16.msra.mxu0 0
    %70 = vmatpush.bf16.msra.mxu0 %v57
    %71 = vmatpush.bf16.msra.mxu0 %v56
    %72 = vmatmul.bf16.gmra.mxu0 %v62
    %v73 = vpop.f32.mrf.mxu0
    %v74 = vadd.f32 %v46, %v73
    %v75 = vpop.f32.mrf.mxu0
    %76 = vdwg.mxu0
    %v77 = vmax.f32 %v74, 0.0
    %v78 = vpack.c.bf16 %v77, %v77
    %v79 = vld [vmem:[#allocation2] sm:$0xf]
    %v80 = vld [vmem:[#allocation2 + $0x4] sm:$0xf]
    %v81 = vld [vmem:[#allocation2 + $0x8] sm:$0xf]
    %v82 = vld [vmem:[#allocation2 + $0xc] sm:$0xf]
    %v83 = vld [vmem:[#allocation2 + $0x10] sm:$0xf]
    %v84 = vld [vmem:[#allocation2 + $0x14] sm:$0xf]
    %v85 = vld [vmem:[#allocation2 + $0x18] sm:$0xf]
    %v86 = vld [vmem:[#allocation2 + $0x1c] sm:$0xf]
    %v87 = vld [vmem:[#allocation2 + $0x20] sm:$0xf]
    %v88 = vld [vmem:[#allocation2 + $0x24] sm:$0xf]
    %v89 = vld [vmem:[#allocation2 + $0x28] sm:$0xf]
    %v90 = vld [vmem:[#allocation2 + $0x2c] sm:$0xf]
    %v91 = vld [vmem:[#allocation2 + $0x30] sm:$0xf]
    %v92 = vld [vmem:[#allocation2 + $0x34] sm:$0xf]
    %v93 = vld [vmem:[#allocation2 + $0x38] sm:$0xf]
    %v94 = vld [vmem:[#allocation2 + $0x3c] sm:$0xf]
    %v95 = vld [vmem:[%s4] sm:$0x1]
    %v97 = vperm.slane %v95, 0
    %v115 = vunpack.c.l.b16 %v79
    %v116 = vunpack.c.l.b16 %v80
    %v117 = vunpack.c.l.b16 %v81
    %v118 = vunpack.c.l.b16 %v82
    %v119 = vunpack.c.l.b16 %v83
    %v120 = vunpack.c.l.b16 %v84
    %v121 = vunpack.c.l.b16 %v85
    %v122 = vunpack.c.l.b16 %v86
    %v123 = vunpack.c.l.b16 %v87
    %v124 = vunpack.c.l.b16 %v88
    %v125 = vunpack.c.l.b16 %v89
    %v126 = vunpack.c.l.b16 %v90
    %v127 = vunpack.c.l.b16 %v91
    %v128 = vunpack.c.l.b16 %v92
    %v129 = vunpack.c.l.b16 %v93
    %v130 = vunpack.c.l.b16 %v94
    %v131 = vpack.c.b16 %v116, %v115
    %v132 = vpack.c.b16 %v118, %v117
    %v133 = vpack.c.b16 %v120, %v119
    %v134 = vpack.c.b16 %v122, %v121
    %v135 = vpack.c.b16 %v124, %v123
    %v136 = vpack.c.b16 %v126, %v125
    %v137 = vpack.c.b16 %v128, %v127
    %v138 = vpack.c.b16 %v130, %v129
    %147 = vmatpush.bf16.msra.mxu0 %v138
    %148 = vmatpush.bf16.msra.mxu0 %v137
    %149 = vmatpush.bf16.msra.mxu0 %v136
    %150 = vmatpush.bf16.msra.mxu0 %v135
    %151 = vmatpush.bf16.msra.mxu0 %v134
    %152 = vmatpush.bf16.msra.mxu0 %v133
    %153 = vmatpush.bf16.msra.mxu0 %v132
    %154 = vmatpush.bf16.msra.mxu0 %v131
    %155 = vmatmul.bf16.gmra.mxu0 %v78
    %v156 = vpop.f32.mrf.mxu0
    %v157 = vadd.f32 %v97, %v156
    %v158 = vpop.f32.mrf.mxu0
    %159 = vdwg.mxu0
    %vm160 = vcmask 80896
    %161 = vst.msk [vmem:[#allocation5] sm:$0xff] %vm160, %v157
    // Predicated region
    $region26: #{net_forward.1} parent=1 // pred_check
      _
    $region27: #{net_forward.1} parent=1 // pred_check_branch
      %163 = sbr.rel (0) target = $region29
    $region28: #{net_forward.1} parent=1 // pred_region
      %165 = vsyncadd [#allocation4], 0
      %s167 = sshll.u32 [#allocation5], 4
      %s168 = int_to_ptr.vmem [resolvable:$true] %s167
      %s169 = sshll.u32 %s5, 4
      %s170 = int_to_ptr.hbm [resolvable:$true] %s169
      %172 = dma.vmem_to_hbm [thread:$0]  %s168, 128, %s170, [#allocation4]
    $region29: #{net_forward.1} parent=1 // pred_fallthru
      _
    // Predicated region
    $region30: #{net_forward.1} parent=1 // pred_check
      _
    $region31: #{net_forward.1} parent=1 // pred_check_branch
      %174 = sbr.rel (0) target = $region33
    $region32: #{net_forward.1} parent=1 // pred_region
      %176 = dma.done [#allocation4], 128
    $region33: #{net_forward.1} parent=1 // pred_fallthru
      _
    %177 = vsyncpa [#allocation3], 1
    %178 = vsyncpa [#allocation4], 1

</llo_original>
